<compile_context>
chip_gen: v7x
topology: tpu7x:2x2x1
jax: 0.10.0
libtpu: 0.0.40
codegen_flags: <defaults>
</compile_context>

<pallas_src>
import functools

import jax
import jax.numpy as jnp
from jax.experimental import pallas as pl
from jax.experimental.pallas import tpu as pltpu


def _round_up(n, m):
    return ((n + m - 1) // m) * m


def churn_kernel(x_ref, w1_ref, b1_ref, w2_ref, b2_ref, w3_ref, b3_ref, o_ref):
    # Layer 1 (BatchNorm already folded into w1/b1): bf16 MXU, f32 accumulate.
    h1 = jnp.dot(x_ref[...], w1_ref[...],
                 preferred_element_type=jnp.float32) + b1_ref[...]
    h1 = jnp.maximum(h1, 0.0)                                   # ReLU (f32, VPU)

    # Layer 2.
    h2 = jnp.dot(h1.astype(jnp.bfloat16), w2_ref[...],
                 preferred_element_type=jnp.float32) + b2_ref[...]
    h2 = jnp.maximum(h2, 0.0)

    # Output layer, lane-dense: (1, H2) @ (H2, TB) -> (1, TB).  Batch on lanes
    # avoids the N=1 matmul + width-1 masked stores of the naive layout.
    logit = jnp.dot(w3_ref[...], h2.T,
                    preferred_element_type=jnp.float32) + b3_ref[...]
    prob = jax.nn.sigmoid(logit)                                # (1, TB), f32
    o_ref[...] = prob.reshape(o_ref.shape).astype(o_ref.dtype)


@functools.partial(jax.jit, static_argnames=("eps", "tile_b"))
def churn_forward(x, bn_gamma, bn_beta, bn_mean, bn_var,
                  w1, b1, w2, b2, w3, b3, eps=1e-5, tile_b=1024):
    """Eval-mode forward. x: [B, F] f32. Linear weights in PyTorch (out, in) layout."""
    B, F = x.shape
    H1 = w1.shape[0]
    H2 = w2.shape[0]

    # ---- Fold BatchNorm1d (running stats) into the first Linear --------------
    #   bn(x) = x * scale + shift
    #   bn(x) @ W1^T + b1 = x @ (scale[:,None] * W1^T) + (shift @ W1^T + b1)
    # (jit-compiled once per shape, so this folding / the transposes are not
    #  re-materialized per inference call.)
    scale = bn_gamma / jnp.sqrt(bn_var + eps)                   # (F,)
    shift = bn_beta - bn_mean * scale                           # (F,)
    w1_folded = scale[:, None] * w1.T                           # (F, H1)
    b1_folded = shift @ w1.T + b1                               # (H1,)

    # ---- Batch tiling ---------------------------------------------------------
    tb = min(int(tile_b), _round_up(B, 16))
    tb = _round_up(tb, 16)                  # bf16 sublane packing / (8,128) rule
    padded_b = _round_up(B, tb)
    num_tiles = padded_b // tb
    if padded_b != B:
        x = jnp.pad(x, ((0, padded_b - B), (0, 0)))

    # ---- Operand prep: bf16 for the MXU streams, f32 biases / final stage -----
    x_bf = x.astype(jnp.bfloat16)
    w1_bf = w1_folded.astype(jnp.bfloat16)                      # (F, H1)
    w2_bf = w2.T.astype(jnp.bfloat16)                           # (H1, H2)
    b1_r = b1_folded.reshape(1, H1).astype(jnp.float32)
    b2_r = b2.reshape(1, H2).astype(jnp.float32)
    w3_r = w3.reshape(1, H2).astype(jnp.float32)                # tiny; keep f32
    b3_r = b3.reshape(1, 1).astype(jnp.float32)

    const2 = lambda i: (0, 0)
    out = pl.pallas_call(
        churn_kernel,
        out_shape=jax.ShapeDtypeStruct((num_tiles, 1, tb), jnp.float32),
        grid=(num_tiles,),
        in_specs=[
            pl.BlockSpec((tb, F), lambda i: (i, 0)),    # x: streamed per tile
            pl.BlockSpec((F, H1), const2),              # weights: VMEM-resident
            pl.BlockSpec((1, H1), const2),
            pl.BlockSpec((H1, H2), const2),
            pl.BlockSpec((1, H2), const2),
            pl.BlockSpec((1, H2), const2),
            pl.BlockSpec((1, 1), const2),
        ],
        out_specs=pl.BlockSpec((1, 1, tb), lambda i: (i, 0, 0)),
        compiler_params=pltpu.CompilerParams(
            dimension_semantics=("parallel",)),
    )(x_bf, w1_bf, b1_r, w2_bf, b2_r, w3_r, b3_r)

    # (num_tiles, 1, tb) -> (B, 1)
    return out.reshape(padded_b)[:B].reshape(B, 1)


def reference_forward(x, bn_gamma, bn_beta, bn_mean, bn_var,
                      w1, b1, w2, b2, w3, b3, eps=1e-5):
    """Pure-JAX reference for correctness checking (eval-mode semantics)."""
    xn = (x - bn_mean) / jnp.sqrt(bn_var + eps) * bn_gamma + bn_beta
    h1 = jnp.maximum(xn @ w1.T + b1, 0.0)
    h2 = jnp.maximum(h1 @ w2.T + b2, 0.0)
    return jax.nn.sigmoid(h2 @ w3.T + b3)


if __name__ == "__main__":
    INPUT_DIM = 32
    HIDDEN = [64, 32]

    key = jax.random.PRNGKey(0)
    keys = jax.random.split(key, 12)

    bn_gamma = 1.0 + 0.1 * jax.random.normal(keys[1], (INPUT_DIM,), dtype=jnp.float32)
    bn_beta = 0.1 * jax.random.normal(keys[2], (INPUT_DIM,), dtype=jnp.float32)
    bn_mean = 0.05 * jax.random.normal(keys[3], (INPUT_DIM,), dtype=jnp.float32)
    bn_var = 1.0 + 0.1 * jnp.abs(jax.random.normal(keys[4], (INPUT_DIM,), dtype=jnp.float32))

    # nn.Linear weights: (out_features, in_features)
    w1 = 0.1 * jax.random.normal(keys[5], (HIDDEN[0], INPUT_DIM), dtype=jnp.float32)
    b1 = 0.1 * jax.random.normal(keys[6], (HIDDEN[0],), dtype=jnp.float32)
    w2 = 0.1 * jax.random.normal(keys[7], (HIDDEN[1], HIDDEN[0]), dtype=jnp.float32)
    b2 = 0.1 * jax.random.normal(keys[8], (HIDDEN[1],), dtype=jnp.float32)
    w3 = 0.1 * jax.random.normal(keys[9], (1, HIDDEN[1]), dtype=jnp.float32)
    b3 = 0.1 * jax.random.normal(keys[10], (1,), dtype=jnp.float32)

    # Case 1: tiny batch (single grid step, padded to the 16-row tile).
    B1 = 8
    x1 = jax.random.normal(keys[0], (B1, INPUT_DIM), dtype=jnp.float32)
    out1 = jax.block_until_ready(churn_forward(
        x1, bn_gamma, bn_beta, bn_mean, bn_var, w1, b1, w2, b2, w3, b3))
    ref1 = reference_forward(x1, bn_gamma, bn_beta, bn_mean, bn_var,
                             w1, b1, w2, b2, w3, b3)
    assert out1.shape == (B1, 1)
    # bf16 input/weight stream with f32 accumulation -> loosened tolerance.
    assert jnp.allclose(out1, ref1, atol=1e-2, rtol=1e-2), (out1, ref1)

    # Case 2: exercises the batch grid + padding path (3 tiles of 16 rows).
    B2 = 40
    x2 = jax.random.normal(keys[11], (B2, INPUT_DIM), dtype=jnp.float32)
    out2 = jax.block_until_ready(churn_forward(
        x2, bn_gamma, bn_beta, bn_mean, bn_var, w1, b1, w2, b2, w3, b3,
        tile_b=16))
    ref2 = reference_forward(x2, bn_gamma, bn_beta, bn_mean, bn_var,
                             w1, b1, w2, b2, w3, b3)
    assert out2.shape == (B2, 1)
    assert jnp.allclose(out2, ref2, atol=1e-2, rtol=1e-2), (out2, ref2)

    print("KERNEL_OK")
</pallas_src>

<mosaic_0001>
module attributes {stable_mosaic.version = 11 : i64} {
  func.func @churn_kernel(%arg0: i32, %arg1: memref<16x32xbf16, #tpu.memory_space<vmem>>, %arg2: memref<32x64xbf16, #tpu.memory_space<vmem>>, %arg3: memref<1x64xf32, #tpu.memory_space<vmem>>, %arg4: memref<64x32xbf16, #tpu.memory_space<vmem>>, %arg5: memref<1x32xf32, #tpu.memory_space<vmem>>, %arg6: memref<1x32xf32, #tpu.memory_space<vmem>>, %arg7: memref<1x1xf32, #tpu.memory_space<vmem>>, %arg8: memref<1x1x16xf32, #tpu.memory_space<vmem>>) attributes {dimension_semantics = [#tpu.dimension_semantics<parallel>], iteration_bounds = array<i64: 1>, scalar_prefetch = 0 : i64, scratch_operands = 0 : i64, tpu.core_type = #tpu.core_type<tc>, window_params = [{transform_indices = @transform_0, window_bounds = array<i64: 16, 32>}, {pipeline_mode = #tpu.pipeline_mode<synchronous>, transform_indices = @transform_1, window_bounds = array<i64: 32, 64>}, {pipeline_mode = #tpu.pipeline_mode<synchronous>, transform_indices = @transform_2, window_bounds = array<i64: 1, 64>}, {pipeline_mode = #tpu.pipeline_mode<synchronous>, transform_indices = @transform_3, window_bounds = array<i64: 64, 32>}, {pipeline_mode = #tpu.pipeline_mode<synchronous>, transform_indices = @transform_4, window_bounds = array<i64: 1, 32>}, {pipeline_mode = #tpu.pipeline_mode<synchronous>, transform_indices = @transform_5, window_bounds = array<i64: 1, 32>}, {pipeline_mode = #tpu.pipeline_mode<synchronous>, transform_indices = @transform_6, window_bounds = array<i64: 1, 1>}, {transform_indices = @transform_7, window_bounds = array<i64: 1, 1, 16>}]} {
    %c0 = arith.constant 0 : index
    %c0_0 = arith.constant 0 : index
    %0 = vector.load %arg1[%c0, %c0_0] : memref<16x32xbf16, #tpu.memory_space<vmem>>, vector<16x32xbf16>
    %c0_1 = arith.constant 0 : index
    %c0_2 = arith.constant 0 : index
    %1 = vector.load %arg2[%c0_1, %c0_2] : memref<32x64xbf16, #tpu.memory_space<vmem>>, vector<32x64xbf16>
    %cst = arith.constant dense<0.000000e+00> : vector<16x64xf32>
    %2 = tpu.matmul %0, %1, %cst {dimension_numbers = #tpu.dot_dimension_numbers<[1], [0], [0], [1], [0, 0, 1, 1], [], []>} : vector<16x32xbf16>, vector<32x64xbf16>, vector<16x64xf32> -> vector<16x64xf32>
    %c0_3 = arith.constant 0 : index
    %c0_4 = arith.constant 0 : index
    %3 = vector.load %arg3[%c0_3, %c0_4] : memref<1x64xf32, #tpu.memory_space<vmem>>, vector<1x64xf32>
    %4 = vector.broadcast %3 : vector<1x64xf32> to vector<16x64xf32>
    %5 = arith.addf %2, %4 : vector<16x64xf32>
    %cst_5 = arith.constant 0.000000e+00 : f32
    %6 = vector.broadcast %cst_5 : f32 to vector<16x64xf32>
    %7 = arith.maximumf %5, %6 : vector<16x64xf32>
    %8 = arith.truncf %7 : vector<16x64xf32> to vector<16x64xbf16>
    %c0_6 = arith.constant 0 : index
    %c0_7 = arith.constant 0 : index
    %9 = vector.load %arg4[%c0_6, %c0_7] : memref<64x32xbf16, #tpu.memory_space<vmem>>, vector<64x32xbf16>
    %cst_8 = arith.constant dense<0.000000e+00> : vector<16x32xf32>
    %10 = tpu.matmul %8, %9, %cst_8 {dimension_numbers = #tpu.dot_dimension_numbers<[1], [0], [0], [1], [0, 0, 1, 1], [], []>} : vector<16x64xbf16>, vector<64x32xbf16>, vector<16x32xf32> -> vector<16x32xf32>
    %c0_9 = arith.constant 0 : index
    %c0_10 = arith.constant 0 : index
    %11 = vector.load %arg5[%c0_9, %c0_10] : memref<1x32xf32, #tpu.memory_space<vmem>>, vector<1x32xf32>
    %12 = vector.broadcast %11 : vector<1x32xf32> to vector<16x32xf32>
    %13 = arith.addf %10, %12 : vector<16x32xf32>
    %cst_11 = arith.constant 0.000000e+00 : f32
    %14 = vector.broadcast %cst_11 : f32 to vector<16x32xf32>
    %15 = arith.maximumf %13, %14 : vector<16x32xf32>
    %c0_12 = arith.constant 0 : index
    %c0_13 = arith.constant 0 : index
    %16 = vector.load %arg6[%c0_12, %c0_13] : memref<1x32xf32, #tpu.memory_space<vmem>>, vector<1x32xf32>
    %17 = tpu.transpose %15, [1, 0] : vector<16x32xf32> -> vector<32x16xf32>
    %cst_14 = arith.constant dense<0.000000e+00> : vector<1x16xf32>
    %18 = tpu.matmul %16, %17, %cst_14 {dimension_numbers = #tpu.dot_dimension_numbers<[1], [0], [0], [1], [0, 0, 1, 1], [], []>} : vector<1x32xf32>, vector<32x16xf32>, vector<1x16xf32> -> vector<1x16xf32>
    %c0_15 = arith.constant 0 : index
    %c0_16 = arith.constant 0 : index
    %19 = vector.load %arg7[%c0_15, %c0_16] : memref<1x1xf32, #tpu.memory_space<vmem>>, vector<1x1xf32>
    %20 = vector.broadcast %19 : vector<1x1xf32> to vector<1x16xf32>
    %21 = arith.addf %18, %20 : vector<1x16xf32>
    %22 = arith.negf %21 : vector<1x16xf32>
    %23 = math.exp %22 : vector<1x16xf32>
    %cst_17 = arith.constant 1.000000e+00 : f32
    %24 = vector.broadcast %cst_17 : f32 to vector<1x16xf32>
    %25 = arith.addf %24, %23 : vector<1x16xf32>
    %26 = arith.divf %24, %25 : vector<1x16xf32>
    %27 = vector.shape_cast %26 : vector<1x16xf32> to vector<1x1x16xf32>
    %c0_18 = arith.constant 0 : index
    %c0_19 = arith.constant 0 : index
    %c0_20 = arith.constant 0 : index
    %28 = vector.load %arg8[%c0_18, %c0_19, %c0_20] : memref<1x1x16xf32, #tpu.memory_space<vmem>>, vector<1x1x16xf32>
    tpu.vector_store %arg8[%c0_18, %c0_19, %c0_20], %27 {strides = array<i32>} : memref<1x1x16xf32, #tpu.memory_space<vmem>>, vector<1x1x16xf32>,
    return
  }
  func.func @transform_0(%arg0: i32) -> (i32, i32) {
    %c0_i32 = arith.constant 0 : i32
    %c0_i32_0 = arith.constant 0 : i32
    return %arg0, %c0_i32 : i32, i32
  }
  func.func @transform_1(%arg0: i32) -> (i32, i32) {
    %c0_i32 = arith.constant 0 : i32
    %c0_i32_0 = arith.constant 0 : i32
    %c0_i32_1 = arith.constant 0 : i32
    return %c0_i32, %c0_i32_0 : i32, i32
  }
  func.func @transform_2(%arg0: i32) -> (i32, i32) {
    %c0_i32 = arith.constant 0 : i32
    %c0_i32_0 = arith.constant 0 : i32
    %c0_i32_1 = arith.constant 0 : i32
    return %c0_i32, %c0_i32_0 : i32, i32
  }
  func.func @transform_3(%arg0: i32) -> (i32, i32) {
    %c0_i32 = arith.constant 0 : i32
    %c0_i32_0 = arith.constant 0 : i32
    %c0_i32_1 = arith.constant 0 : i32
    return %c0_i32, %c0_i32_0 : i32, i32
  }
  func.func @transform_4(%arg0: i32) -> (i32, i32) {
    %c0_i32 = arith.constant 0 : i32
    %c0_i32_0 = arith.constant 0 : i32
    %c0_i32_1 = arith.constant 0 : i32
    return %c0_i32, %c0_i32_0 : i32, i32
  }
  func.func @transform_5(%arg0: i32) -> (i32, i32) {
    %c0_i32 = arith.constant 0 : i32
    %c0_i32_0 = arith.constant 0 : i32
    %c0_i32_1 = arith.constant 0 : i32
    return %c0_i32, %c0_i32_0 : i32, i32
  }
  func.func @transform_6(%arg0: i32) -> (i32, i32) {
    %c0_i32 = arith.constant 0 : i32
    %c0_i32_0 = arith.constant 0 : i32
    %c0_i32_1 = arith.constant 0 : i32
    return %c0_i32, %c0_i32_0 : i32, i32
  }
  func.func @transform_7(%arg0: i32) -> (i32, i32, i32) {
    %c0_i32 = arith.constant 0 : i32
    %c0_i32_0 = arith.constant 0 : i32
    %c0_i32_1 = arith.constant 0 : i32
    return %arg0, %c0_i32, %c0_i32_0 : i32, i32, i32
  }
}

</mosaic_0001>

<llo_original>
// kernel: churn_forward.1
$region0: #{churn_forward.1}
  #allocation0 [shape = 'u32[]', space=smem, size = 0x4, offset = 0x4, fixed_abs, tag = 'smem constant byte address 0x4 - core index']
  #allocation1 [shape = 'u32[144,128]{1,0:T(1,128)}', space=vmem, size = 0x12000, scoped, tag = 'internal scratch']
  #allocation2 [shape = 'f32[1,1]{1,0:T(1,128)S(1)}', space=vmem, size = 0x200, scoped, tag = 'scoped memory for churn_forward.1']
  %s0 = inlined_call_operand.vmem [shape: bf16[16,32], index: 0, kind: input, shape index: {}]
  %s1 = inlined_call_operand.vmem [shape: bf16[32,64], index: 1, kind: input, shape index: {}]
  %s2 = inlined_call_operand.vmem [shape: f32[1,64], index: 2, kind: input, shape index: {}]
  %s3 = inlined_call_operand.vmem [shape: bf16[64,32], index: 3, kind: input, shape index: {}]
  %s4 = inlined_call_operand.vmem [shape: f32[1,32], index: 4, kind: input, shape index: {}]
  %s5 = inlined_call_operand.vmem [shape: f32[1,32], index: 5, kind: input, shape index: {}]
  %s6 = inlined_call_operand.<no memory space> [shape: f32[1,1], index: 6, kind: input, shape index: {}]
  %s7 = inlined_call_operand.vmem [shape: f32[1,1,16], index: 7, kind: output, shape index: {}]
  %s8 = sld [smem:[#allocation0]]
  $region38: #{churn_forward.1} parent=0
    _
  %s10 = ssub.s32 1, %s8
  %s11 = scalar_select 0, %s10, %s8
  %v12 = vstv %s6
  %13 = vst [vmem:[#allocation2] sm:$0x1] %v12
  // Predicated region
  $region2: #{churn_forward.1} parent=0 // pred_check
    _
  $region3: #{churn_forward.1} parent=0 // pred_check_branch
    %15 = sbr.rel (0) target = $region5
  $region4: #{churn_forward.1} parent=0 // pred_region
    _
  $region5: #{churn_forward.1} parent=0 // pred_fallthru
    _
  // Predicated region
  $region6: #{churn_forward.1} parent=0 // pred_check
    _
  $region7: #{churn_forward.1} parent=0 // pred_check_branch
    %17 = sbr.rel (0) target = $region9
  $region8: #{churn_forward.1} parent=0 // pred_region
    _
  $region9: #{churn_forward.1} parent=0 // pred_fallthru
    _
  // Predicated region
  $region10: #{churn_forward.1} parent=0 // pred_check
    _
  $region11: #{churn_forward.1} parent=0 // pred_check_branch
    %19 = sbr.rel (0) target = $region13
  $region12: #{churn_forward.1} parent=0 // pred_region
    _
  $region13: #{churn_forward.1} parent=0 // pred_fallthru
    _
  // Predicated region
  $region14: #{churn_forward.1} parent=0 // pred_check
    _
  $region15: #{churn_forward.1} parent=0 // pred_check_branch
    %21 = sbr.rel (0) target = $region17
  $region16: #{churn_forward.1} parent=0 // pred_region
    _
  $region17: #{churn_forward.1} parent=0 // pred_fallthru
    _
  // Predicated region
  $region18: #{churn_forward.1} parent=0 // pred_check
    _
  $region19: #{churn_forward.1} parent=0 // pred_check_branch
    %23 = sbr.rel (0) target = $region21
  $region20: #{churn_forward.1} parent=0 // pred_region
    _
  $region21: #{churn_forward.1} parent=0 // pred_fallthru
    _
  // Predicated region
  $region22: #{churn_forward.1} parent=0 // pred_check
    _
  $region23: #{churn_forward.1} parent=0 // pred_check_branch
    %25 = sbr.rel (0) target = $region25
  $region24: #{churn_forward.1} parent=0 // pred_region
    _
  $region25: #{churn_forward.1} parent=0 // pred_fallthru
    _
  // Predicated region
  $region26: #{churn_forward.1} parent=0 // pred_check
    _
  $region27: #{churn_forward.1} parent=0 // pred_check_branch
    %27 = sbr.rel (0) target = $region29
  $region28: #{churn_forward.1} parent=0 // pred_region
    _
  $region29: #{churn_forward.1} parent=0 // pred_fallthru
    _
  %v29 = vld [vmem:[%s0] sm:$0xf]
  %v30 = vld [vmem:[%s0 + $0x4] sm:$0xf]
  %v31 = vld [vmem:[%s1] sm:$0xf]
  %v32 = vld [vmem:[%s1 + $0x4] sm:$0xf]
  %v33 = vld [vmem:[%s1 + $0x8] sm:$0xf]
  %v34 = vld [vmem:[%s1 + $0xc] sm:$0xf]
  %v35 = vld [vmem:[%s2] sm:$0x1]
  %v37 = vlaneseq
  %v38 = vshrl.u32 %v37, 7
  %v39 = vsub.s32 0, %v38
  %v40 = vrot.slane %v35, %v39
  %v44 = vunpack.c.l.b16 %v29
  %v45 = vunpack.c.l.b16 %v30
  %v46 = vpack.c.b16 %v45, %v44
  %v51 = vunpack.c.l.b16 %v31
  %v52 = vunpack.c.l.b16 %v32
  %v53 = vunpack.c.l.b16 %v33
  %v54 = vunpack.c.l.b16 %v34
  %v55 = vpack.c.b16 %v52, %v51
  %v56 = vpack.c.b16 %v54, %v53
  %vm59 = vcmask 261120
  %v61 = vsel %vm59, %v46, 0
  %63 = vmatprep.subr.bf16.mxu0 0
  %64 = vmatpush1.bf16.msra.mxu0 %v55
  %65 = vmatprep.subr.bf16.mxu0 0
  %66 = vmatpush1.bf16.msra.mxu0 %v56
  %67 = vmatprep.subr.bf16.mxu0 0
  %68 = vmatpush1.bf16.msra.mxu0 0
  %69 = vmatprep.subr.bf16.mxu0 0
  %70 = vmatpush1.bf16.msra.mxu0 0
  %71 = vmatprep.subr.bf16.mxu0 0
  %72 = vmatpush1.bf16.msra.mxu0 0
  %73 = vmatprep.subr.bf16.mxu0 0
  %74 = vmatpush1.bf16.msra.mxu0 0
  %75 = vmatprep.subr.bf16.mxu0 0
  %76 = vmatpush1.bf16.msra.mxu0 0
  %77 = vmatprep.subr.bf16.mxu0 0
  %78 = vmatpush1.bf16.msra.mxu0 0
  %79 = vmatprep.subr.bf16.mxu0 0
  %80 = vmatpush1.bf16.msra.mxu0 0
  %81 = vmatprep.subr.bf16.mxu0 0
  %82 = vmatpush1.bf16.msra.mxu0 0
  %83 = vmatprep.subr.bf16.mxu0 0
  %84 = vmatpush1.bf16.msra.mxu0 0
  %85 = vmatprep.subr.bf16.mxu0 0
  %86 = vmatpush1.bf16.msra.mxu0 0
  %87 = vmatprep.subr.bf16.mxu0 0
  %88 = vmatpush1.bf16.msra.mxu0 0
  %89 = vmatprep.subr.bf16.mxu0 0
  %90 = vmatpush1.bf16.msra.mxu0 0
  %91 = vmatprep.subr.bf16.mxu0 0
  %92 = vmatpush1.bf16.msra.mxu0 0
  %93 = vmatprep.subr.bf16.mxu0 0
  %94 = vmatpush1.bf16.msra.mxu0 0
  %95 = vmatprep.mubr.bf16.mxu0 0
  %96 = vmatmul.mubr.bf16.gmra.mrb[0].mxu0 %v61
  %v97 = vpop.f32.mrb[0].mxu0
  %v98 = vadd.f32 %v40, %v97
  %v99 = vpop.f32.mrb[0].mxu0
  %v100 = vpop.f32.mrb[0].mxu0
  %v101 = vadd.f32 %v40, %v100
  %v102 = vpop.f32.mrb[0].mxu0
  %103 = vdwg.mxu0
  %v104 = vmax.f32 %v98, 0.0
  %v105 = vmax.f32 %v101, 0.0
  %v106 = vpack.c.bf16 %v105, %v104
  %v107 = vld [vmem:[%s3] sm:$0xf]
  %v108 = vld [vmem:[%s3 + $0x4] sm:$0xf]
  %v109 = vld [vmem:[%s3 + $0x8] sm:$0xf]
  %v110 = vld [vmem:[%s3 + $0xc] sm:$0xf]
  %v111 = vld [vmem:[%s3 + $0x10] sm:$0xf]
  %v112 = vld [vmem:[%s3 + $0x14] sm:$0xf]
  %v113 = vld [vmem:[%s3 + $0x18] sm:$0xf]
  %v114 = vld [vmem:[%s3 + $0x1c] sm:$0xf]
  %v115 = vld [vmem:[%s4] sm:$0x1]
  %v117 = vlaneseq
  %v118 = vshrl.u32 %v117, 7
  %v119 = vsub.s32 0, %v118
  %v120 = vrot.slane %v115, %v119
  %v130 = vunpack.c.l.b16 %v107
  %v131 = vunpack.c.l.b16 %v108
  %v132 = vunpack.c.l.b16 %v109
  %v133 = vunpack.c.l.b16 %v110
  %v134 = vunpack.c.l.b16 %v111
  %v135 = vunpack.c.l.b16 %v112
  %v136 = vunpack.c.l.b16 %v113
  %v137 = vunpack.c.l.b16 %v114
  %v138 = vpack.c.b16 %v131, %v130
  %v139 = vpack.c.b16 %v133, %v132
  %v140 = vpack.c.b16 %v135, %v134
  %v141 = vpack.c.b16 %v137, %v136
  %vm146 = vcmask 523264
  %v148 = vsel %vm146, %v106, 0
  %150 = vmatprep.subr.bf16.mxu0 0
  %151 = vmatpush1.bf16.msra.mxu0 %v138
  %152 = vmatprep.subr.bf16.mxu0 0
  %153 = vmatpush1.bf16.msra.mxu0 %v139
  %154 = vmatprep.subr.bf16.mxu0 0
  %155 = vmatpush1.bf16.msra.mxu0 %v140
  %156 = vmatprep.subr.bf16.mxu0 0
  %157 = vmatpush1.bf16.msra.mxu0 %v141
  %158 = vmatprep.subr.bf16.mxu0 0
  %159 = vmatpush1.bf16.msra.mxu0 0
  %160 = vmatprep.subr.bf16.mxu0 0
  %161 = vmatpush1.bf16.msra.mxu0 0
  %162 = vmatprep.subr.bf16.mxu0 0
  %163 = vmatpush1.bf16.msra.mxu0 0
  %164 = vmatprep.subr.bf16.mxu0 0
  %165 = vmatpush1.bf16.msra.mxu0 0
  %166 = vmatprep.subr.bf16.mxu0 0
  %167 = vmatpush1.bf16.msra.mxu0 0
  %168 = vmatprep.subr.bf16.mxu0 0
  %169 = vmatpush1.bf16.msra.mxu0 0
  %170 = vmatprep.subr.bf16.mxu0 0
  %171 = vmatpush1.bf16.msra.mxu0 0
  %172 = vmatprep.subr.bf16.mxu0 0
  %173 = vmatpush1.bf16.msra.mxu0 0
  %174 = vmatprep.subr.bf16.mxu0 0
  %175 = vmatpush1.bf16.msra.mxu0 0
  %176 = vmatprep.subr.bf16.mxu0 0
  %177 = vmatpush1.bf16.msra.mxu0 0
  %178 = vmatprep.subr.bf16.mxu0 0
  %179 = vmatpush1.bf16.msra.mxu0 0
  %180 = vmatprep.subr.bf16.mxu0 0
  %181 = vmatpush1.bf16.msra.mxu0 0
  %182 = vmatprep.mubr.bf16.mxu0 0
  %183 = vmatmul.mubr.bf16.gmra.mrb[0].mxu0 %v148
  %v184 = vpop.f32.mrb[0].mxu0
  %v185 = vadd.f32 %v120, %v184
  %v186 = vpop.f32.mrb[0].mxu0
  %v187 = vpop.f32.mrb[0].mxu0
  %v188 = vadd.f32 %v120, %v187
  %v189 = vpop.f32.mrb[0].mxu0
  %190 = vdwg.mxu0
  %v191 = vmax.f32 %v185, 0.0
  %v192 = vmax.f32 %v188, 0.0
  %v193 = vld [vmem:[%s5] sm:$0x1]
  %v194 = vld [vmem:[#allocation2] sm:$0x1]
  %196 = vset.pattern.permute.xlu0 0
  %197 = vperm.xlu0 %196, %v194
  %v198 = vpop.permute.xlu0 %197
  %v200 = vlaneseq
  %v201 = vshrl.u32 %v200, 7
  %v202 = vsub.s32 0, %v201
  %v203 = vrot.slane %v198, %v202
  %v205 = vsel %vm59, %v193, 0
  %v208 = vsel %vm59, %v191, 0
  %v211 = vsel %vm59, %v192, 0
  %213 = vmatprep.subr.mxu0 0.0
  %214 = vmatpush1.xpose.msra.mxu0 %v208
  %215 = vmatprep.subr.mxu0 0.0
  %216 = vmatpush1.xpose.msra.mxu0 %v211
  %217 = vmatprep.subr.mxu0 0.0
  %218 = vmatpush1.xpose.msra.mxu0 0.0
  %219 = vmatprep.subr.mxu0 0.0
  %220 = vmatpush1.xpose.msra.mxu0 0.0
  %221 = vmatprep.subr.mxu0 0.0
  %222 = vmatpush1.xpose.msra.mxu0 0.0
  %223 = vmatprep.subr.mxu0 0.0
  %224 = vmatpush1.xpose.msra.mxu0 0.0
  %225 = vmatprep.subr.mxu0 0.0
  %226 = vmatpush1.xpose.msra.mxu0 0.0
  %227 = vmatprep.subr.mxu0 0.0
  %228 = vmatpush1.xpose.msra.mxu0 0.0
  %229 = vmatprep.subr.mxu0 0.0
  %230 = vmatpush1.xpose.msra.mxu0 0.0
  %231 = vmatprep.subr.mxu0 0.0
  %232 = vmatpush1.xpose.msra.mxu0 0.0
  %233 = vmatprep.subr.mxu0 0.0
  %234 = vmatpush1.xpose.msra.mxu0 0.0
  %235 = vmatprep.subr.mxu0 0.0
  %236 = vmatpush1.xpose.msra.mxu0 0.0
  %237 = vmatprep.subr.mxu0 0.0
  %238 = vmatpush1.xpose.msra.mxu0 0.0
  %239 = vmatprep.subr.mxu0 0.0
  %240 = vmatpush1.xpose.msra.mxu0 0.0
  %241 = vmatprep.subr.mxu0 0.0
  %242 = vmatpush1.xpose.msra.mxu0 0.0
  %243 = vmatprep.subr.mxu0 0.0
  %244 = vmatpush1.xpose.msra.mxu0 0.0
  %245 = vmatprep.subr.mxu0 0.0
  %246 = vmatpush1.xpose.msra.mxu0 0.0
  %247 = vmatprep.subr.mxu0 0.0
  %248 = vmatpush1.xpose.msra.mxu0 0.0
  %249 = vmatprep.subr.mxu0 0.0
  %250 = vmatpush1.xpose.msra.mxu0 0.0
  %251 = vmatprep.subr.mxu0 0.0
  %252 = vmatpush1.xpose.msra.mxu0 0.0
  %253 = vmatprep.subr.mxu0 0.0
  %254 = vmatpush1.xpose.msra.mxu0 0.0
  %255 = vmatprep.subr.mxu0 0.0
  %256 = vmatpush1.xpose.msra.mxu0 0.0
  %257 = vmatprep.subr.mxu0 0.0
  %258 = vmatpush1.xpose.msra.mxu0 0.0
  %259 = vmatprep.subr.mxu0 0.0
  %260 = vmatpush1.xpose.msra.mxu0 0.0
  %261 = vmatprep.subr.mxu0 0.0
  %262 = vmatpush1.xpose.msra.mxu0 0.0
  %263 = vmatprep.subr.mxu0 0.0
  %264 = vmatpush1.xpose.msra.mxu0 0.0
  %265 = vmatprep.subr.mxu0 0.0
  %266 = vmatpush1.xpose.msra.mxu0 0.0
  %267 = vmatprep.subr.mxu0 0.0
  %268 = vmatpush1.xpose.msra.mxu0 0.0
  %269 = vmatprep.subr.mxu0 0.0
  %270 = vmatpush1.xpose.msra.mxu0 0.0
  %271 = vmatprep.subr.mxu0 0.0
  %272 = vmatpush1.xpose.msra.mxu0 0.0
  %273 = vmatprep.subr.mxu0 0.0
  %274 = vmatpush1.xpose.msra.mxu0 0.0
  %275 = vmatprep.subr.mxu0 0.0
  %276 = vmatpush1.xpose.msra.mxu0 0.0
  %277 = vmatprep.mubr.f32.mxu0 0.0
  %278 = vmatmul.mubr.f32.gmra.mrb[0].mxu0 %v205
  %v279 = vpop.f32.mrb[0].mxu0
  %v280 = vadd.f32 %v203, %v279
  %v281 = vpop.f32.mrb[0].mxu0
  %282 = vdwg.mxu0
  %v283 = vxor.u32 %v280, 2147483648
  %v284 = vmul.f32 %v283, 1.442695
  %v285 = vpow.pop %v284
  %v286 = vadd.f32 %v285, 1.0
  %v287 = vrcp.pop %v286
  %v288 = vmul.f32 1.0, %v287
  %vm289 = vcmask 122880
  %290 = vst.msk [vmem:[%s7] sm:$0x1] %vm289, %v288
  // Predicated region
  $region30: #{churn_forward.1} parent=0 // pred_check
    _
  $region31: #{churn_forward.1} parent=0 // pred_check_branch
    %292 = sbr.rel (0) target = $region33
  $region32: #{churn_forward.1} parent=0 // pred_region
    _
  $region33: #{churn_forward.1} parent=0 // pred_fallthru
    _
  // Predicated region
  $region34: #{churn_forward.1} parent=0 // pred_check
    _
  $region35: #{churn_forward.1} parent=0 // pred_check_branch
    %294 = sbr.rel (0) target = $region37
  $region36: #{churn_forward.1} parent=0 // pred_region
    _
  $region37: #{churn_forward.1} parent=0 // pred_fallthru
    _

</llo_original>
